<compile_context>
chip_gen: v5e
topology: v5e:2x2
jax: 0.10.0
libtpu: 0.0.40
codegen_flags: <defaults>
</compile_context>

<pallas_src>
import functools
import numpy as np

import jax
import jax.numpy as jnp
from jax import lax
from jax.experimental import pallas as pl
from jax.experimental.pallas import tpu as pltpu

NEG_SLOPE = 0.01


def _round_up(x, m):
    return ((x + m - 1) // m) * m


def dilation_block_kernel(x_ref, wtap_ref, spos_ref, sneg_ref, lpos_ref, lneg_ref,
                          sel_ref, bias_ref, w0_ref, out_ref, ld_ref, *,
                          dilations, kernel_size, dim, strip, groups):
    """All L flow layers applied strip-by-strip to one (TB, Dp) row tile."""
    K = kernel_size
    Dp = x_ref.shape[-1]
    nstrips = x_ref.shape[0] // strip

    def strip_body(s, carry):
        r0 = pl.multiple_of(s * strip, strip)
        x = x_ref[pl.ds(r0, strip), :]          # strip stays vreg-resident across layers
        ld = jnp.zeros_like(x)                  # local logdet accumulator (per lane)

        for l, d in enumerate(dilations):       # static unroll, L = log2(D)+1
            # k = 0 tap: scalar weight + scalar bias from SMEM
            y = x * w0_ref[l] + bias_ref[l]
            # k >= 1 taps: lane-rolled copies * masked tap-weight rows (VPU + XLU)
            for k in range(1, K):
                off = k * d
                if off >= dim:                  # tap reads only zero padding
                    continue
                xr = pltpu.roll(x, shift=Dp - off, axis=1)   # x shifted left by `off`
                y = y + xr * wtap_ref[pl.ds(l * K + k, 1), :]

            pos = y >= 0.0
            # leaky-ReLU folded into rescale, plus skip connection
            x = y * jnp.where(pos, spos_ref[pl.ds(l, 1), :],
                              sneg_ref[pl.ds(l, 1), :]) + x
            # log|grad*scale*w0 + 1| has exactly two values per (layer, lane)
            ld = ld + jnp.where(pos, lpos_ref[pl.ds(l, 1), :],
                                lneg_ref[pl.ds(l, 1), :])

        out_ref[pl.ds(r0, strip), :] = x
        if groups == 1:
            ld_ref[pl.ds(r0, strip), :] = jnp.sum(ld, axis=-1, keepdims=True)
        else:
            # per-packed-group lane reduction on the otherwise-idle MXU
            ld_ref[pl.ds(r0, strip), :] = jnp.dot(
                ld, sel_ref[...], preferred_element_type=jnp.float32)
        return carry

    lax.fori_loop(0, nstrips, strip_body, 0)


def dilation_block_forward(x, conv_w, conv_b, lmbd, *, kernel_size, dilations,
                           target_block_bytes=2 << 20):
    B, D = x.shape
    L = len(dilations)
    K = kernel_size

    # ---- lane packing: g batch rows per 128-lane group when D < 128 ----
    g = max(1, 128 // D) if D < 128 else 1
    GD = g * D
    Dp = _round_up(GD, 128)
    Bg = -(-B // g)                                   # packed rows

    # sublane strip: keep each strip-sized value <= ~4 vregs
    strip = max(8, min(32, ((512 * 8) // Dp) // 8 * 8))

    # row tile: ~2 MiB x blocks, >= 2 grid steps when possible (v7x has 2 TCs)
    Bg_sb = _round_up(Bg, strip)
    tb_target = max(strip, (target_block_bytes // (Dp * 4)) // strip * strip)
    TB = min(tb_target, Bg_sb)
    if Bg_sb >= 2 * strip:
        TB = min(TB, _round_up(max(Bg_sb // 2, strip), strip))
    Bg_pad = _round_up(Bg_sb, TB)
    nb = Bg_pad // TB

    # ---- pack / pad x (only when actually needed) ----
    x32 = x.astype(jnp.float32)
    if Bg * g != B:
        x32 = jnp.pad(x32, ((0, Bg * g - B), (0, 0)))
    xp = x32.reshape(Bg, GD)
    if Bg_pad != Bg or Dp != GD:
        xp = jnp.pad(xp, ((0, Bg_pad - Bg), (0, Dp - GD)))

    # ---- parameter-only math hoisted out of the kernel ----
    w = jnp.asarray(conv_w, jnp.float32)              # (L, K)
    b = jnp.asarray(conv_b, jnp.float32)              # (L,)   -> SMEM
    lm = jnp.asarray(lmbd, jnp.float32)               # (L, D)
    w0 = w[:, 0:1]                                    # (L, 1)

    sp = jax.nn.softplus(lm)
    scale = jnp.where(w0 == 0.0, lm,
                      jnp.where(w0 > 0.0, -1.0 / w0 + sp, -1.0 / w0 - sp))   # (L, D)
    scale_neg = NEG_SLOPE * scale
    logpos = jnp.log(jnp.abs(scale * w0 + 1.0))               # grad = 1
    logneg = jnp.log(jnp.abs(scale_neg * w0 + 1.0))           # grad = NEG_SLOPE

    # tile per-feature rows across the g packed groups; zero in padded lanes
    lane = np.arange(Dp)
    local = lane % D
    valid = lane < GD
    take = jnp.asarray(local, jnp.int32)
    valid_j = jnp.asarray(valid)[None, :]

    def tile_lanes(a):                                # (L, D) -> (L, Dp)
        if g == 1 and Dp == D:
            return a
        return jnp.where(valid_j, jnp.take(a, take, axis=1), 0.0)

    spos_p = tile_lanes(scale)
    sneg_p = tile_lanes(scale_neg)
    lpos_p = tile_lanes(logpos)
    lneg_p = tile_lanes(logneg)

    # masked conv-tap weights for k >= 1: right zero-padding + packed-group isolation
    mask_np = np.zeros((L * K, Dp), np.float32)
    for l, d in enumerate(dilations):
        for k in range(1, K):
            off = k * d
            if off >= D:
                continue
            mask_np[l * K + k] = (valid & (local + off < D)).astype(np.float32)
    wtap = jnp.asarray(mask_np) * w.reshape(L * K, 1)          # (L*K, Dp)

    # lane -> packed-group selector for the in-kernel logdet reduction
    sel_np = np.zeros((Dp, g), np.float32)
    sel_np[np.arange(GD), np.arange(GD) // D] = 1.0
    sel = jnp.asarray(sel_np)

    kernel = functools.partial(dilation_block_kernel,
                               dilations=tuple(int(d) for d in dilations),
                               kernel_size=K, dim=D, strip=strip, groups=g)

    row_spec = pl.BlockSpec((TB, Dp), lambda i: (i, 0))
    ld_spec = pl.BlockSpec((TB, g), lambda i: (i, 0))
    full_spec = lambda shape: pl.BlockSpec(shape, lambda i: (0, 0))
    smem_spec = pl.BlockSpec(memory_space=pltpu.MemorySpace.SMEM)

    flops = Bg_pad * Dp * L * (2 * K + 8) + 2 * Bg_pad * Dp * g
    param_bytes = 4 * ((L * K + 4 * L) * Dp + Dp * g + 2 * L)
    bytes_accessed = 4 * (2 * Bg_pad * Dp + Bg_pad * g) + param_bytes
    vmem_limit = 2 * (4 * (2 * TB * Dp + TB * g) + param_bytes) + (4 << 20)
    vmem_limit = int(min(max(vmem_limit, 8 << 20), 48 << 20))   # fits v7x 64 MiB VMEM

    out_p, ld_p = pl.pallas_call(
        kernel,
        out_shape=(jax.ShapeDtypeStruct((Bg_pad, Dp), jnp.float32),
                   jax.ShapeDtypeStruct((Bg_pad, g), jnp.float32)),
        grid=(nb,),
        in_specs=[row_spec,                    # packed x row tile
                  full_spec((L * K, Dp)),      # masked tap weights (k >= 1)
                  full_spec((L, Dp)),          # scale
                  full_spec((L, Dp)),          # NEG_SLOPE * scale
                  full_spec((L, Dp)),          # log|scale*w0+1|
                  full_spec((L, Dp)),          # log|0.01*scale*w0+1|
                  full_spec((Dp, g)),          # lane->group selector
                  smem_spec,                   # bias scalars
                  smem_spec],                  # w0 scalars
        out_specs=(row_spec, ld_spec),
        compiler_params=pltpu.CompilerParams(
            dimension_semantics=("parallel",),
            vmem_limit_bytes=vmem_limit),
        cost_estimate=pl.CostEstimate(flops=int(flops), transcendentals=0,
                                      bytes_accessed=int(bytes_accessed)),
    )(xp, wtap, spos_p, sneg_p, lpos_p, lneg_p, sel, b, w[:, 0])

    out = out_p[:Bg, :GD].reshape(Bg * g, D)[:B]
    logdet = ld_p[:Bg, :].reshape(Bg * g)[:B]
    return out, logdet


def reference_forward(x, conv_w, conv_b, lmbd, *, kernel_size, dilations):
    """Pure-JAX replica of Dilation_Block.forward (skip=True, rescale=True, test_mode=0)."""
    B, D = x.shape
    out = x.astype(jnp.float32)
    logdet_sum = jnp.zeros((B,), jnp.float32)
    for l, d in enumerate(dilations):
        w = jnp.asarray(conv_w[l], jnp.float32)
        bb = jnp.asarray(conv_b[l], jnp.float32)
        lm = jnp.asarray(lmbd[l], jnp.float32)
        pad = (kernel_size - 1) * d
        xp = jnp.pad(out, ((0, 0), (0, pad)))
        y = bb + sum(w[k] * xp[:, k * d:k * d + D] for k in range(kernel_size))
        act = jnp.where(y >= 0.0, y, NEG_SLOPE * y)
        grad = jnp.where(act >= 0.0, 1.0, NEG_SLOPE)
        w0 = w[0]
        sp = jax.nn.softplus(lm)
        scale = jnp.where(w0 == 0.0, lm,
                          jnp.where(w0 > 0.0, -1.0 / w0 + sp, -1.0 / w0 - sp))
        new_out = act * scale + out
        grad_s = grad * scale
        logdet_sum = logdet_sum + jnp.sum(jnp.log(jnp.abs(grad_s * w0 + 1.0)), axis=1)
        out = new_out
    return out, logdet_sum


def _run_case(B, D, K, key):
    dilations = []
    i = 0
    while 2 ** i <= D:                     # Dilation_Block: dilation = 2**i while <= dim
        dilations.append(2 ** i)
        i += 1
    L = len(dilations)

    kx, kw, kb, kl = jax.random.split(key, 4)
    x = jax.random.normal(kx, (B, D), jnp.float32)
    conv_w = 0.5 + 0.3 * jax.random.normal(kw, (L, K), jnp.float32)  # keep w[0] away from 0
    conv_b = 0.1 * jax.random.normal(kb, (L,), jnp.float32)
    lmbd = jax.random.normal(kl, (L, D), jnp.float32)

    out, logdet = dilation_block_forward(
        x, conv_w, conv_b, lmbd, kernel_size=K, dilations=dilations)
    out = jax.block_until_ready(out)
    logdet = jax.block_until_ready(logdet)

    ref_out, ref_logdet = reference_forward(
        x, conv_w, conv_b, lmbd, kernel_size=K, dilations=dilations)

    if not np.allclose(np.asarray(out), np.asarray(ref_out), rtol=2e-3, atol=2e-3):
        raise AssertionError(f"output mismatch vs reference (B={B}, D={D})")
    if not np.allclose(np.asarray(logdet), np.asarray(ref_logdet), rtol=2e-3, atol=2e-3):
        raise AssertionError(f"logdet mismatch vs reference (B={B}, D={D})")


if __name__ == "__main__":
    key = jax.random.PRNGKey(0)
    k0, k1 = jax.random.split(key, 2)
    _run_case(2, 16, 3, k0)     # small-D: lane-packed path (g = 8), MXU group reduction
    _run_case(8, 128, 3, k1)    # D >= 128: unpacked path (g = 1), lane-sum logdet
    print("KERNEL_OK")
</pallas_src>

<mosaic_0001>
module attributes {stable_mosaic.version = 11 : i64} {
  func.func @dilation_block_kernel(%arg0: i32, %arg1: memref<32x128xf32, #tpu.memory_space<vmem>>, %arg2: memref<15x128xf32, #tpu.memory_space<vmem>>, %arg3: memref<5x128xf32, #tpu.memory_space<vmem>>, %arg4: memref<5x128xf32, #tpu.memory_space<vmem>>, %arg5: memref<5x128xf32, #tpu.memory_space<vmem>>, %arg6: memref<5x128xf32, #tpu.memory_space<vmem>>, %arg7: memref<128x8xf32, #tpu.memory_space<vmem>>, %arg8: memref<5xf32, #tpu.memory_space<smem>>, %arg9: memref<5xf32, #tpu.memory_space<smem>>, %arg10: memref<32x128xf32, #tpu.memory_space<vmem>>, %arg11: memref<32x8xf32, #tpu.memory_space<vmem>>) attributes {dimension_semantics = [#tpu.dimension_semantics<parallel>], iteration_bounds = array<i64: 1>, scalar_prefetch = 0 : i64, scratch_operands = 0 : i64, tpu.core_type = #tpu.core_type<tc>, window_params = [{transform_indices = @transform_0, window_bounds = array<i64: 32, 128>}, {pipeline_mode = #tpu.pipeline_mode<synchronous>, transform_indices = @transform_1, window_bounds = array<i64: 15, 128>}, {pipeline_mode = #tpu.pipeline_mode<synchronous>, transform_indices = @transform_2, window_bounds = array<i64: 5, 128>}, {pipeline_mode = #tpu.pipeline_mode<synchronous>, transform_indices = @transform_3, window_bounds = array<i64: 5, 128>}, {pipeline_mode = #tpu.pipeline_mode<synchronous>, transform_indices = @transform_4, window_bounds = array<i64: 5, 128>}, {pipeline_mode = #tpu.pipeline_mode<synchronous>, transform_indices = @transform_5, window_bounds = array<i64: 5, 128>}, {pipeline_mode = #tpu.pipeline_mode<synchronous>, transform_indices = @transform_6, window_bounds = array<i64: 128, 8>}, {transform_indices = @transform_7, window_bounds = array<i64: 5>}, {transform_indices = @transform_8, window_bounds = array<i64: 5>}, {transform_indices = @transform_9, window_bounds = array<i64: 32, 128>}, {transform_indices = @transform_10, window_bounds = array<i64: 32, 8>}]} {
    %c0_i32 = arith.constant 0 : i32
    %c32_i32 = arith.constant 32 : i32
    %0 = arith.muli %c0_i32, %c32_i32 : i32
    %1 = tpu.assume_multiple %0, 32 : i32
    %2 = arith.index_cast %1 : i32 to index
    %c0 = arith.constant 0 : index
    %3 = vector.load %arg1[%2, %c0] : memref<32x128xf32, #tpu.memory_space<vmem>>, vector<32x128xf32>
    %cst = arith.constant 0.000000e+00 : f32
    %4 = vector.broadcast %cst : f32 to vector<32x128xf32>
    %c0_0 = arith.constant 0 : index
    %5 = memref.load %arg9[%c0_0] : memref<5xf32, #tpu.memory_space<smem>>
    %6 = vector.broadcast %5 : f32 to vector<32x128xf32>
    %7 = arith.mulf %3, %6 : vector<32x128xf32>
    %c0_1 = arith.constant 0 : index
    %8 = memref.load %arg8[%c0_1] : memref<5xf32, #tpu.memory_space<smem>>
    %9 = vector.broadcast %8 : f32 to vector<32x128xf32>
    %10 = arith.addf %7, %9 : vector<32x128xf32>
    %c127_i32 = arith.constant 127 : i32
    %11 = tpu.dynamic_rotate %3 by %c127_i32 dim 1 : vector<32x128xf32>, i32 -> vector<32x128xf32>
    %c1 = arith.constant 1 : index
    %c0_2 = arith.constant 0 : index
    %12 = vector.load %arg2[%c1, %c0_2] : memref<15x128xf32, #tpu.memory_space<vmem>>, vector<1x128xf32>
    %13 = vector.broadcast %12 : vector<1x128xf32> to vector<32x128xf32>
    %14 = arith.mulf %11, %13 : vector<32x128xf32>
    %15 = arith.addf %10, %14 : vector<32x128xf32>
    %c126_i32 = arith.constant 126 : i32
    %16 = tpu.dynamic_rotate %3 by %c126_i32 dim 1 : vector<32x128xf32>, i32 -> vector<32x128xf32>
    %c2 = arith.constant 2 : index
    %c0_3 = arith.constant 0 : index
    %17 = vector.load %arg2[%c2, %c0_3] : memref<15x128xf32, #tpu.memory_space<vmem>>, vector<1x128xf32>
    %18 = vector.broadcast %17 : vector<1x128xf32> to vector<32x128xf32>
    %19 = arith.mulf %16, %18 : vector<32x128xf32>
    %20 = arith.addf %15, %19 : vector<32x128xf32>
    %cst_4 = arith.constant 0.000000e+00 : f32
    %21 = vector.broadcast %cst_4 : f32 to vector<32x128xf32>
    %22 = arith.cmpf oge, %20, %21 : vector<32x128xf32>
    %c0_5 = arith.constant 0 : index
    %c0_6 = arith.constant 0 : index
    %23 = vector.load %arg3[%c0_5, %c0_6] : memref<5x128xf32, #tpu.memory_space<vmem>>, vector<1x128xf32>
    %c0_7 = arith.constant 0 : index
    %c0_8 = arith.constant 0 : index
    %24 = vector.load %arg4[%c0_7, %c0_8] : memref<5x128xf32, #tpu.memory_space<vmem>>, vector<1x128xf32>
    %25 = vector.shape_cast %23 : vector<1x128xf32> to vector<1x128xf32>
    %26 = vector.broadcast %25 : vector<1x128xf32> to vector<32x128xf32>
    %27 = vector.shape_cast %24 : vector<1x128xf32> to vector<1x128xf32>
    %28 = vector.broadcast %27 : vector<1x128xf32> to vector<32x128xf32>
    %29 = arith.select %22, %26, %28 : vector<32x128xi1>, vector<32x128xf32>
    %30 = arith.mulf %20, %29 : vector<32x128xf32>
    %31 = arith.addf %30, %3 : vector<32x128xf32>
    %c0_9 = arith.constant 0 : index
    %c0_10 = arith.constant 0 : index
    %32 = vector.load %arg5[%c0_9, %c0_10] : memref<5x128xf32, #tpu.memory_space<vmem>>, vector<1x128xf32>
    %c0_11 = arith.constant 0 : index
    %c0_12 = arith.constant 0 : index
    %33 = vector.load %arg6[%c0_11, %c0_12] : memref<5x128xf32, #tpu.memory_space<vmem>>, vector<1x128xf32>
    %34 = vector.shape_cast %32 : vector<1x128xf32> to vector<1x128xf32>
    %35 = vector.broadcast %34 : vector<1x128xf32> to vector<32x128xf32>
    %36 = vector.shape_cast %33 : vector<1x128xf32> to vector<1x128xf32>
    %37 = vector.broadcast %36 : vector<1x128xf32> to vector<32x128xf32>
    %38 = arith.select %22, %35, %37 : vector<32x128xi1>, vector<32x128xf32>
    %39 = arith.addf %4, %38 : vector<32x128xf32>
    %c1_13 = arith.constant 1 : index
    %40 = memref.load %arg9[%c1_13] : memref<5xf32, #tpu.memory_space<smem>>
    %41 = vector.broadcast %40 : f32 to vector<32x128xf32>
    %42 = arith.mulf %31, %41 : vector<32x128xf32>
    %c1_14 = arith.constant 1 : index
    %43 = memref.load %arg8[%c1_14] : memref<5xf32, #tpu.memory_space<smem>>
    %44 = vector.broadcast %43 : f32 to vector<32x128xf32>
    %45 = arith.addf %42, %44 : vector<32x128xf32>
    %c126_i32_15 = arith.constant 126 : i32
    %46 = tpu.dynamic_rotate %31 by %c126_i32_15 dim 1 : vector<32x128xf32>, i32 -> vector<32x128xf32>
    %c4 = arith.constant 4 : index
    %c0_16 = arith.constant 0 : index
    %47 = vector.load %arg2[%c4, %c0_16] : memref<15x128xf32, #tpu.memory_space<vmem>>, vector<1x128xf32>
    %48 = vector.broadcast %47 : vector<1x128xf32> to vector<32x128xf32>
    %49 = arith.mulf %46, %48 : vector<32x128xf32>
    %50 = arith.addf %45, %49 : vector<32x128xf32>
    %c124_i32 = arith.constant 124 : i32
    %51 = tpu.dynamic_rotate %31 by %c124_i32 dim 1 : vector<32x128xf32>, i32 -> vector<32x128xf32>
    %c5 = arith.constant 5 : index
    %c0_17 = arith.constant 0 : index
    %52 = vector.load %arg2[%c5, %c0_17] : memref<15x128xf32, #tpu.memory_space<vmem>>, vector<1x128xf32>
    %53 = vector.broadcast %52 : vector<1x128xf32> to vector<32x128xf32>
    %54 = arith.mulf %51, %53 : vector<32x128xf32>
    %55 = arith.addf %50, %54 : vector<32x128xf32>
    %cst_18 = arith.constant 0.000000e+00 : f32
    %56 = vector.broadcast %cst_18 : f32 to vector<32x128xf32>
    %57 = arith.cmpf oge, %55, %56 : vector<32x128xf32>
    %c1_19 = arith.constant 1 : index
    %c0_20 = arith.constant 0 : index
    %58 = vector.load %arg3[%c1_19, %c0_20] : memref<5x128xf32, #tpu.memory_space<vmem>>, vector<1x128xf32>
    %c1_21 = arith.constant 1 : index
    %c0_22 = arith.constant 0 : index
    %59 = vector.load %arg4[%c1_21, %c0_22] : memref<5x128xf32, #tpu.memory_space<vmem>>, vector<1x128xf32>
    %60 = vector.shape_cast %58 : vector<1x128xf32> to vector<1x128xf32>
    %61 = vector.broadcast %60 : vector<1x128xf32> to vector<32x128xf32>
    %62 = vector.shape_cast %59 : vector<1x128xf32> to vector<1x128xf32>
    %63 = vector.broadcast %62 : vector<1x128xf32> to vector<32x128xf32>
    %64 = arith.select %57, %61, %63 : vector<32x128xi1>, vector<32x128xf32>
    %65 = arith.mulf %55, %64 : vector<32x128xf32>
    %66 = arith.addf %65, %31 : vector<32x128xf32>
    %c1_23 = arith.constant 1 : index
    %c0_24 = arith.constant 0 : index
    %67 = vector.load %arg5[%c1_23, %c0_24] : memref<5x128xf32, #tpu.memory_space<vmem>>, vector<1x128xf32>
    %c1_25 = arith.constant 1 : index
    %c0_26 = arith.constant 0 : index
    %68 = vector.load %arg6[%c1_25, %c0_26] : memref<5x128xf32, #tpu.memory_space<vmem>>, vector<1x128xf32>
    %69 = vector.shape_cast %67 : vector<1x128xf32> to vector<1x128xf32>
    %70 = vector.broadcast %69 : vector<1x128xf32> to vector<32x128xf32>
    %71 = vector.shape_cast %68 : vector<1x128xf32> to vector<1x128xf32>
    %72 = vector.broadcast %71 : vector<1x128xf32> to vector<32x128xf32>
    %73 = arith.select %57, %70, %72 : vector<32x128xi1>, vector<32x128xf32>
    %74 = arith.addf %39, %73 : vector<32x128xf32>
    %c2_27 = arith.constant 2 : index
    %75 = memref.load %arg9[%c2_27] : memref<5xf32, #tpu.memory_space<smem>>
    %76 = vector.broadcast %75 : f32 to vector<32x128xf32>
    %77 = arith.mulf %66, %76 : vector<32x128xf32>
    %c2_28 = arith.constant 2 : index
    %78 = memref.load %arg8[%c2_28] : memref<5xf32, #tpu.memory_space<smem>>
    %79 = vector.broadcast %78 : f32 to vector<32x128xf32>
    %80 = arith.addf %77, %79 : vector<32x128xf32>
    %c124_i32_29 = arith.constant 124 : i32
    %81 = tpu.dynamic_rotate %66 by %c124_i32_29 dim 1 : vector<32x128xf32>, i32 -> vector<32x128xf32>
    %c7 = arith.constant 7 : index
    %c0_30 = arith.constant 0 : index
    %82 = vector.load %arg2[%c7, %c0_30] : memref<15x128xf32, #tpu.memory_space<vmem>>, vector<1x128xf32>
    %83 = vector.broadcast %82 : vector<1x128xf32> to vector<32x128xf32>
    %84 = arith.mulf %81, %83 : vector<32x128xf32>
    %85 = arith.addf %80, %84 : vector<32x128xf32>
    %c120_i32 = arith.constant 120 : i32
    %86 = tpu.dynamic_rotate %66 by %c120_i32 dim 1 : vector<32x128xf32>, i32 -> vector<32x128xf32>
    %c8 = arith.constant 8 : index
    %c0_31 = arith.constant 0 : index
    %87 = vector.load %arg2[%c8, %c0_31] : memref<15x128xf32, #tpu.memory_space<vmem>>, vector<1x128xf32>
    %88 = vector.broadcast %87 : vector<1x128xf32> to vector<32x128xf32>
    %89 = arith.mulf %86, %88 : vector<32x128xf32>
    %90 = arith.addf %85, %89 : vector<32x128xf32>
    %cst_32 = arith.constant 0.000000e+00 : f32
    %91 = vector.broadcast %cst_32 : f32 to vector<32x128xf32>
    %92 = arith.cmpf oge, %90, %91 : vector<32x128xf32>
    %c2_33 = arith.constant 2 : index
    %c0_34 = arith.constant 0 : index
    %93 = vector.load %arg3[%c2_33, %c0_34] : memref<5x128xf32, #tpu.memory_space<vmem>>, vector<1x128xf32>
    %c2_35 = arith.constant 2 : index
    %c0_36 = arith.constant 0 : index
    %94 = vector.load %arg4[%c2_35, %c0_36] : memref<5x128xf32, #tpu.memory_space<vmem>>, vector<1x128xf32>
    %95 = vector.shape_cast %93 : vector<1x128xf32> to vector<1x128xf32>
    %96 = vector.broadcast %95 : vector<1x128xf32> to vector<32x128xf32>
    %97 = vector.shape_cast %94 : vector<1x128xf32> to vector<1x128xf32>
    %98 = vector.broadcast %97 : vector<1x128xf32> to vector<32x128xf32>
    %99 = arith.select %92, %96, %98 : vector<32x128xi1>, vector<32x128xf32>
    %100 = arith.mulf %90, %99 : vector<32x128xf32>
    %101 = arith.addf %100, %66 : vector<32x128xf32>
    %c2_37 = arith.constant 2 : index
    %c0_38 = arith.constant 0 : index
    %102 = vector.load %arg5[%c2_37, %c0_38] : memref<5x128xf32, #tpu.memory_space<vmem>>, vector<1x128xf32>
    %c2_39 = arith.constant 2 : index
    %c0_40 = arith.constant 0 : index
    %103 = vector.load %arg6[%c2_39, %c0_40] : memref<5x128xf32, #tpu.memory_space<vmem>>, vector<1x128xf32>
    %104 = vector.shape_cast %102 : vector<1x128xf32> to vector<1x128xf32>
    %105 = vector.broadcast %104 : vector<1x128xf32> to vector<32x128xf32>
    %106 = vector.shape_cast %103 : vector<1x128xf32> to vector<1x128xf32>
    %107 = vector.broadcast %106 : vector<1x128xf32> to vector<32x128xf32>
    %108 = arith.select %92, %105, %107 : vector<32x128xi1>, vector<32x128xf32>
    %109 = arith.addf %74, %108 : vector<32x128xf32>
    %c3 = arith.constant 3 : index
    %110 = memref.load %arg9[%c3] : memref<5xf32, #tpu.memory_space<smem>>
    %111 = vector.broadcast %110 : f32 to vector<32x128xf32>
    %112 = arith.mulf %101, %111 : vector<32x128xf32>
    %c3_41 = arith.constant 3 : index
    %113 = memref.load %arg8[%c3_41] : memref<5xf32, #tpu.memory_space<smem>>
    %114 = vector.broadcast %113 : f32 to vector<32x128xf32>
    %115 = arith.addf %112, %114 : vector<32x128xf32>
    %c120_i32_42 = arith.constant 120 : i32
    %116 = tpu.dynamic_rotate %101 by %c120_i32_42 dim 1 : vector<32x128xf32>, i32 -> vector<32x128xf32>
    %c10 = arith.constant 10 : index
    %c0_43 = arith.constant 0 : index
    %117 = vector.load %arg2[%c10, %c0_43] : memref<15x128xf32, #tpu.memory_space<vmem>>, vector<1x128xf32>
    %118 = vector.broadcast %117 : vector<1x128xf32> to vector<32x128xf32>
    %119 = arith.mulf %116, %118 : vector<32x128xf32>
    %120 = arith.addf %115, %119 : vector<32x128xf32>
    %cst_44 = arith.constant 0.000000e+00 : f32
    %121 = vector.broadcast %cst_44 : f32 to vector<32x128xf32>
    %122 = arith.cmpf oge, %120, %121 : vector<32x128xf32>
    %c3_45 = arith.constant 3 : index
    %c0_46 = arith.constant 0 : index
    %123 = vector.load %arg3[%c3_45, %c0_46] : memref<5x128xf32, #tpu.memory_space<vmem>>, vector<1x128xf32>
    %c3_47 = arith.constant 3 : index
    %c0_48 = arith.constant 0 : index
    %124 = vector.load %arg4[%c3_47, %c0_48] : memref<5x128xf32, #tpu.memory_space<vmem>>, vector<1x128xf32>
    %125 = vector.shape_cast %123 : vector<1x128xf32> to vector<1x128xf32>
    %126 = vector.broadcast %125 : vector<1x128xf32> to vector<32x128xf32>
    %127 = vector.shape_cast %124 : vector<1x128xf32> to vector<1x128xf32>
    %128 = vector.broadcast %127 : vector<1x128xf32> to vector<32x128xf32>
    %129 = arith.select %122, %126, %128 : vector<32x128xi1>, vector<32x128xf32>
    %130 = arith.mulf %120, %129 : vector<32x128xf32>
    %131 = arith.addf %130, %101 : vector<32x128xf32>
    %c3_49 = arith.constant 3 : index
    %c0_50 = arith.constant 0 : index
    %132 = vector.load %arg5[%c3_49, %c0_50] : memref<5x128xf32, #tpu.memory_space<vmem>>, vector<1x128xf32>
    %c3_51 = arith.constant 3 : index
    %c0_52 = arith.constant 0 : index
    %133 = vector.load %arg6[%c3_51, %c0_52] : memref<5x128xf32, #tpu.memory_space<vmem>>, vector<1x128xf32>
    %134 = vector.shape_cast %132 : vector<1x128xf32> to vector<1x128xf32>
    %135 = vector.broadcast %134 : vector<1x128xf32> to vector<32x128xf32>
    %136 = vector.shape_cast %133 : vector<1x128xf32> to vector<1x128xf32>
    %137 = vector.broadcast %136 : vector<1x128xf32> to vector<32x128xf32>
    %138 = arith.select %122, %135, %137 : vector<32x128xi1>, vector<32x128xf32>
    %139 = arith.addf %109, %138 : vector<32x128xf32>
    %c4_53 = arith.constant 4 : index
    %140 = memref.load %arg9[%c4_53] : memref<5xf32, #tpu.memory_space<smem>>
    %141 = vector.broadcast %140 : f32 to vector<32x128xf32>
    %142 = arith.mulf %131, %141 : vector<32x128xf32>
    %c4_54 = arith.constant 4 : index
    %143 = memref.load %arg8[%c4_54] : memref<5xf32, #tpu.memory_space<smem>>
    %144 = vector.broadcast %143 : f32 to vector<32x128xf32>
    %145 = arith.addf %142, %144 : vector<32x128xf32>
    %cst_55 = arith.constant 0.000000e+00 : f32
    %146 = vector.broadcast %cst_55 : f32 to vector<32x128xf32>
    %147 = arith.cmpf oge, %145, %146 : vector<32x128xf32>
    %c4_56 = arith.constant 4 : index
    %c0_57 = arith.constant 0 : index
    %148 = vector.load %arg3[%c4_56, %c0_57] : memref<5x128xf32, #tpu.memory_space<vmem>>, vector<1x128xf32>
    %c4_58 = arith.constant 4 : index
    %c0_59 = arith.constant 0 : index
    %149 = vector.load %arg4[%c4_58, %c0_59] : memref<5x128xf32, #tpu.memory_space<vmem>>, vector<1x128xf32>
    %150 = vector.shape_cast %148 : vector<1x128xf32> to vector<1x128xf32>
    %151 = vector.broadcast %150 : vector<1x128xf32> to vector<32x128xf32>
    %152 = vector.shape_cast %149 : vector<1x128xf32> to vector<1x128xf32>
    %153 = vector.broadcast %152 : vector<1x128xf32> to vector<32x128xf32>
    %154 = arith.select %147, %151, %153 : vector<32x128xi1>, vector<32x128xf32>
    %155 = arith.mulf %145, %154 : vector<32x128xf32>
    %156 = arith.addf %155, %131 : vector<32x128xf32>
    %c4_60 = arith.constant 4 : index
    %c0_61 = arith.constant 0 : index
    %157 = vector.load %arg5[%c4_60, %c0_61] : memref<5x128xf32, #tpu.memory_space<vmem>>, vector<1x128xf32>
    %c4_62 = arith.constant 4 : index
    %c0_63 = arith.constant 0 : index
    %158 = vector.load %arg6[%c4_62, %c0_63] : memref<5x128xf32, #tpu.memory_space<vmem>>, vector<1x128xf32>
    %159 = vector.shape_cast %157 : vector<1x128xf32> to vector<1x128xf32>
    %160 = vector.broadcast %159 : vector<1x128xf32> to vector<32x128xf32>
    %161 = vector.shape_cast %158 : vector<1x128xf32> to vector<1x128xf32>
    %162 = vector.broadcast %161 : vector<1x128xf32> to vector<32x128xf32>
    %163 = arith.select %147, %160, %162 : vector<32x128xi1>, vector<32x128xf32>
    %164 = arith.addf %139, %163 : vector<32x128xf32>
    %165 = arith.index_cast %1 : i32 to index
    %c0_64 = arith.constant 0 : index
    %166 = vector.load %arg10[%165, %c0_64] : memref<32x128xf32, #tpu.memory_space<vmem>>, vector<32x128xf32>
    tpu.vector_store %arg10[%165, %c0_64], %156 {strides = array<i32>} : memref<32x128xf32, #tpu.memory_space<vmem>>, vector<32x128xf32>,
    %c0_65 = arith.constant 0 : index
    %c0_66 = arith.constant 0 : index
    %167 = vector.load %arg7[%c0_65, %c0_66] : memref<128x8xf32, #tpu.memory_space<vmem>>, vector<128x8xf32>
    %cst_67 = arith.constant dense<0.000000e+00> : vector<32x8xf32>
    %168 = tpu.matmul %164, %167, %cst_67 {dimension_numbers = #tpu.dot_dimension_numbers<[1], [0], [0], [1], [0, 0, 1, 1], [], []>} : vector<32x128xf32>, vector<128x8xf32>, vector<32x8xf32> -> vector<32x8xf32>
    %169 = arith.index_cast %1 : i32 to index
    %c0_68 = arith.constant 0 : index
    %170 = vector.load %arg11[%169, %c0_68] : memref<32x8xf32, #tpu.memory_space<vmem>>, vector<32x8xf32>
    tpu.vector_store %arg11[%169, %c0_68], %168 {strides = array<i32>} : memref<32x8xf32, #tpu.memory_space<vmem>>, vector<32x8xf32>,
    %c1_i32 = arith.constant 1 : i32
    return
  }
  func.func @transform_0(%arg0: i32) -> (i32, i32) {
    %c0_i32 = arith.constant 0 : i32
    %c0_i32_0 = arith.constant 0 : i32
    return %arg0, %c0_i32 : i32, i32
  }
  func.func @transform_1(%arg0: i32) -> (i32, i32) {
    %c0_i32 = arith.constant 0 : i32
    %c0_i32_0 = arith.constant 0 : i32
    %c0_i32_1 = arith.constant 0 : i32
    return %c0_i32, %c0_i32_0 : i32, i32
  }
  func.func @transform_2(%arg0: i32) -> (i32, i32) {
    %c0_i32 = arith.constant 0 : i32
    %c0_i32_0 = arith.constant 0 : i32
    %c0_i32_1 = arith.constant 0 : i32
    return %c0_i32, %c0_i32_0 : i32, i32
  }
  func.func @transform_3(%arg0: i32) -> (i32, i32) {
    %c0_i32 = arith.constant 0 : i32
    %c0_i32_0 = arith.constant 0 : i32
    %c0_i32_1 = arith.constant 0 : i32
    return %c0_i32, %c0_i32_0 : i32, i32
  }
  func.func @transform_4(%arg0: i32) -> (i32, i32) {
    %c0_i32 = arith.constant 0 : i32
    %c0_i32_0 = arith.constant 0 : i32
    %c0_i32_1 = arith.constant 0 : i32
    return %c0_i32, %c0_i32_0 : i32, i32
  }
  func.func @transform_5(%arg0: i32) -> (i32, i32) {
    %c0_i32 = arith.constant 0 : i32
    %c0_i32_0 = arith.constant 0 : i32
    %c0_i32_1 = arith.constant 0 : i32
    return %c0_i32, %c0_i32_0 : i32, i32
  }
  func.func @transform_6(%arg0: i32) -> (i32, i32) {
    %c0_i32 = arith.constant 0 : i32
    %c0_i32_0 = arith.constant 0 : i32
    %c0_i32_1 = arith.constant 0 : i32
    return %c0_i32, %c0_i32_0 : i32, i32
  }
  func.func @transform_7(%arg0: i32) -> i32 {
    %c0_i32 = arith.constant 0 : i32
    %c0_i32_0 = arith.constant 0 : i32
    return %c0_i32 : i32
  }
  func.func @transform_8(%arg0: i32) -> i32 {
    %c0_i32 = arith.constant 0 : i32
    %c0_i32_0 = arith.constant 0 : i32
    return %c0_i32 : i32
  }
  func.func @transform_9(%arg0: i32) -> (i32, i32) {
    %c0_i32 = arith.constant 0 : i32
    %c0_i32_0 = arith.constant 0 : i32
    return %arg0, %c0_i32 : i32, i32
  }
  func.func @transform_10(%arg0: i32) -> (i32, i32) {
    %c0_i32 = arith.constant 0 : i32
    %c0_i32_0 = arith.constant 0 : i32
    return %arg0, %c0_i32 : i32, i32
  }
}

</mosaic_0001>

<llo_original>
// kernel: tpu_custom_call.1
$region0: #{tpu_custom_call.1}
  #allocation0 [shape = 'u32[]', space=smem, size = 0x4, offset = 0x4, fixed_abs, tag = 'smem constant byte address 0x4 - core index']
  #allocation1 [shape = 'u32[72,128]{1,0:T(1,128)}', space=vmem, size = 0x9000, scoped, tag = 'internal scratch']
  %s0 = inlined_call_operand.vmem [shape: f32[32,128], index: 0, kind: input, shape index: {}]
  %s1 = inlined_call_operand.vmem [shape: f32[15,128], index: 1, kind: input, shape index: {}]
  %s2 = inlined_call_operand.vmem [shape: f32[5,128], index: 2, kind: input, shape index: {}]
  %s3 = inlined_call_operand.vmem [shape: f32[5,128], index: 3, kind: input, shape index: {}]
  %s4 = inlined_call_operand.vmem [shape: f32[5,128], index: 4, kind: input, shape index: {}]
  %s5 = inlined_call_operand.vmem [shape: f32[5,128], index: 5, kind: input, shape index: {}]
  %s6 = inlined_call_operand.vmem [shape: f32[128,8], index: 6, kind: input, shape index: {}]
  %s7 = inlined_call_operand.vmem [shape: f32[5], index: 7, kind: input, shape index: {}]
  %s8 = inlined_call_operand.vmem [shape: f32[5], index: 8, kind: input, shape index: {}]
  %s9 = inlined_call_operand.hbm [shape: f32[32,128], index: 9, kind: output, shape index: {0}]
  %s10 = inlined_call_operand.vmem [shape: f32[32,8], index: 10, kind: output, shape index: {1}]
  %11 = xla_tuple %s9, %s10
  %s12 = sld [smem:[#allocation0]]
  $region62: #{tpu_custom_call.1} parent=0
    _
  %s14 = ssub.s32 1, %s12
  %s15 = scalar_select 0, %s14, %s12
  $region1: #{tpu_custom_call.1} parent=0
    #allocation2 [shape = 'u8[512]{0}', space=smem, size = 0x200, scoped, tag = 'input window, operand 7, single buffered']
    #allocation3 [shape = 's32[1]{0}', space=sflag, size = 0x4, scoped, tag = 'scoped memory for tpu_custom_call.1']
    #allocation4 [shape = 's32[1]{0}', space=sflag, size = 0x4, scoped, tag = 'scoped memory for tpu_custom_call.1']
    #allocation5 [shape = 'u8[512]{0}', space=smem, size = 0x200, scoped, tag = 'input window, operand 8, single buffered']
    #allocation6 [shape = 's32[1]{0}', space=sflag, size = 0x4, scoped, tag = 'scoped memory for tpu_custom_call.1']
    #allocation7 [shape = 'u8[16384]{0}', space=vmem, size = 0x4000, scoped, tag = 'output window, operand 0, single buffered']
    %16 = vsyncpa [#allocation4], 0
    %17 = vsyncpa [#allocation6], 0
    %18 = vsyncpa [#allocation3], 0
    // Predicated region
    $region2: #{tpu_custom_call.1} parent=1 // pred_check
      _
    $region3: #{tpu_custom_call.1} parent=1 // pred_check_branch
      %20 = sbr.rel (0) target = $region5
    $region4: #{tpu_custom_call.1} parent=1 // pred_region
      _
    $region5: #{tpu_custom_call.1} parent=1 // pred_fallthru
      _
    // Predicated region
    $region6: #{tpu_custom_call.1} parent=1 // pred_check
      _
    $region7: #{tpu_custom_call.1} parent=1 // pred_check_branch
      %22 = sbr.rel (0) target = $region9
    $region8: #{tpu_custom_call.1} parent=1 // pred_region
      _
    $region9: #{tpu_custom_call.1} parent=1 // pred_fallthru
      _
    // Predicated region
    $region10: #{tpu_custom_call.1} parent=1 // pred_check
      _
    $region11: #{tpu_custom_call.1} parent=1 // pred_check_branch
      %24 = sbr.rel (0) target = $region13
    $region12: #{tpu_custom_call.1} parent=1 // pred_region
      _
    $region13: #{tpu_custom_call.1} parent=1 // pred_fallthru
      _
    // Predicated region
    $region14: #{tpu_custom_call.1} parent=1 // pred_check
      _
    $region15: #{tpu_custom_call.1} parent=1 // pred_check_branch
      %26 = sbr.rel (0) target = $region17
    $region16: #{tpu_custom_call.1} parent=1 // pred_region
      _
    $region17: #{tpu_custom_call.1} parent=1 // pred_fallthru
      _
    // Predicated region
    $region18: #{tpu_custom_call.1} parent=1 // pred_check
      _
    $region19: #{tpu_custom_call.1} parent=1 // pred_check_branch
      %28 = sbr.rel (0) target = $region21
    $region20: #{tpu_custom_call.1} parent=1 // pred_region
      _
    $region21: #{tpu_custom_call.1} parent=1 // pred_fallthru
      _
    // Predicated region
    $region22: #{tpu_custom_call.1} parent=1 // pred_check
      _
    $region23: #{tpu_custom_call.1} parent=1 // pred_check_branch
      %30 = sbr.rel (0) target = $region25
    $region24: #{tpu_custom_call.1} parent=1 // pred_region
      _
    $region25: #{tpu_custom_call.1} parent=1 // pred_fallthru
      _
    // Predicated region
    $region26: #{tpu_custom_call.1} parent=1 // pred_check
      _
    $region27: #{tpu_custom_call.1} parent=1 // pred_check_branch
      %32 = sbr.rel (0) target = $region29
    $region28: #{tpu_custom_call.1} parent=1 // pred_region
      _
    $region29: #{tpu_custom_call.1} parent=1 // pred_fallthru
      _
    // Predicated region
    $region30: #{tpu_custom_call.1} parent=1 // pred_check
      _
    $region31: #{tpu_custom_call.1} parent=1 // pred_check_branch
      %34 = sbr.rel (0) target = $region33
    $region32: #{tpu_custom_call.1} parent=1 // pred_region
      %36 = vsyncadd [#allocation4], 0
      %s38 = sshll.u32 %s7, 4
      %s39 = int_to_ptr.vmem [resolvable:$true] %s38
      %41 = dma.vmem_to_smem %s39, 16, [#allocation2], [#allocation4]
    $region33: #{tpu_custom_call.1} parent=1 // pred_fallthru
      _
    // Predicated region
    $region34: #{tpu_custom_call.1} parent=1 // pred_check
      _
    $region35: #{tpu_custom_call.1} parent=1 // pred_check_branch
      %43 = sbr.rel (0) target = $region37
    $region36: #{tpu_custom_call.1} parent=1 // pred_region
      %45 = vsyncadd [#allocation6], 0
      %s47 = sshll.u32 %s8, 4
      %s48 = int_to_ptr.vmem [resolvable:$true] %s47
      %50 = dma.vmem_to_smem %s48, 16, [#allocation5], [#allocation6]
    $region37: #{tpu_custom_call.1} parent=1 // pred_fallthru
      _
    // Predicated region
    $region38: #{tpu_custom_call.1} parent=1 // pred_check
      _
    $region39: #{tpu_custom_call.1} parent=1 // pred_check_branch
      %52 = sbr.rel (0) target = $region41
    $region40: #{tpu_custom_call.1} parent=1 // pred_region
      %54 = dma.done [#allocation4], 16
    $region41: #{tpu_custom_call.1} parent=1 // pred_fallthru
      _
    // Predicated region
    $region42: #{tpu_custom_call.1} parent=1 // pred_check
      _
    $region43: #{tpu_custom_call.1} parent=1 // pred_check_branch
      %56 = sbr.rel (0) target = $region45
    $region44: #{tpu_custom_call.1} parent=1 // pred_region
      %58 = dma.done [#allocation6], 16
    $region45: #{tpu_custom_call.1} parent=1 // pred_fallthru
      _
    %59 = sfence
    %v60 = vld [vmem:[%s0] sm:$0xff]
    %v61 = vld [vmem:[%s0 + $0x8] sm:$0xff]
    %v62 = vld [vmem:[%s0 + $0x10] sm:$0xff]
    %v63 = vld [vmem:[%s0 + $0x18] sm:$0xff]
    %s64 = sld [smem:[#allocation5]]
    %v65 = vstv %s64
    %v66 = vmul.f32 %v60, %v65
    %v67 = vmul.f32 %v61, %v65
    %v68 = vmul.f32 %v62, %v65
    %v69 = vmul.f32 %v63, %v65
    %s70 = sld [smem:[#allocation2]]
    %v71 = vstv %s70
    %v72 = vadd.f32 %v66, %v71
    %v73 = vadd.f32 %v67, %v71
    %v74 = vadd.f32 %v68, %v71
    %v75 = vadd.f32 %v69, %v71
    %76 = vrot.lane.b32.xlu0 %v60, 127
    %v77 = vpop.permute.xlu0 %76
    %78 = vrot.lane.b32.xlu0 %v61, 127
    %v79 = vpop.permute.xlu0 %78
    %80 = vrot.lane.b32.xlu0 %v62, 127
    %v81 = vpop.permute.xlu0 %80
    %82 = vrot.lane.b32.xlu0 %v63, 127
    %v83 = vpop.permute.xlu0 %82
    %v84 = vld [vmem:[%s1 + $0x1] sm:$0x1]
    %v85 = vperm.slane %v84, 0
    %v86 = vmul.f32 %v77, %v85
    %v87 = vmul.f32 %v79, %v85
    %v88 = vmul.f32 %v81, %v85
    %v89 = vmul.f32 %v83, %v85
    %v90 = vadd.f32 %v72, %v86
    %v91 = vadd.f32 %v73, %v87
    %v92 = vadd.f32 %v74, %v88
    %v93 = vadd.f32 %v75, %v89
    %94 = vrot.lane.b32.xlu0 %v60, 126
    %v95 = vpop.permute.xlu0 %94
    %96 = vrot.lane.b32.xlu0 %v61, 126
    %v97 = vpop.permute.xlu0 %96
    %98 = vrot.lane.b32.xlu0 %v62, 126
    %v99 = vpop.permute.xlu0 %98
    %100 = vrot.lane.b32.xlu0 %v63, 126
    %v101 = vpop.permute.xlu0 %100
    %v102 = vld [vmem:[%s1 + $0x2] sm:$0x1]
    %v103 = vperm.slane %v102, 0
    %v104 = vmul.f32 %v95, %v103
    %v105 = vmul.f32 %v97, %v103
    %v106 = vmul.f32 %v99, %v103
    %v107 = vmul.f32 %v101, %v103
    %v108 = vadd.f32 %v90, %v104
    %v109 = vadd.f32 %v91, %v105
    %v110 = vadd.f32 %v92, %v106
    %v111 = vadd.f32 %v93, %v107
    %vm112 = vcmp.ge.f32.partialorder %v108, 0.0
    %vm113 = vcmp.ge.f32.partialorder %v109, 0.0
    %vm114 = vcmp.ge.f32.partialorder %v110, 0.0
    %vm115 = vcmp.ge.f32.partialorder %v111, 0.0
    %v116 = vld [vmem:[%s2] sm:$0x1]
    %v117 = vld [vmem:[%s3] sm:$0x1]
    %v118 = vperm.slane %v116, 0
    %v119 = vperm.slane %v117, 0
    %v120 = vsel %vm112, %v118, %v119
    %v121 = vsel %vm113, %v118, %v119
    %v122 = vsel %vm114, %v118, %v119
    %v123 = vsel %vm115, %v118, %v119
    %v124 = vmul.f32 %v108, %v120
    %v125 = vmul.f32 %v109, %v121
    %v126 = vmul.f32 %v110, %v122
    %v127 = vmul.f32 %v111, %v123
    %v128 = vadd.f32 %v124, %v60
    %v129 = vadd.f32 %v125, %v61
    %v130 = vadd.f32 %v126, %v62
    %v131 = vadd.f32 %v127, %v63
    %v132 = vld [vmem:[%s4] sm:$0x1]
    %v133 = vld [vmem:[%s5] sm:$0x1]
    %v134 = vperm.slane %v132, 0
    %v135 = vperm.slane %v133, 0
    %v136 = vsel %vm112, %v134, %v135
    %v137 = vsel %vm113, %v134, %v135
    %v138 = vsel %vm114, %v134, %v135
    %v139 = vsel %vm115, %v134, %v135
    %v140 = vadd.f32 %v136, 0.0
    %v141 = vadd.f32 %v137, 0.0
    %v142 = vadd.f32 %v138, 0.0
    %v143 = vadd.f32 %v139, 0.0
    %s144 = sld [smem:[#allocation5 + $0x1]]
    %v145 = vstv %s144
    %v146 = vmul.f32 %v128, %v145
    %v147 = vmul.f32 %v129, %v145
    %v148 = vmul.f32 %v130, %v145
    %v149 = vmul.f32 %v131, %v145
    %s150 = sld [smem:[#allocation2 + $0x1]]
    %v151 = vstv %s150
    %v152 = vadd.f32 %v146, %v151
    %v153 = vadd.f32 %v147, %v151
    %v154 = vadd.f32 %v148, %v151
    %v155 = vadd.f32 %v149, %v151
    %156 = vrot.lane.b32.xlu0 %v128, 126
    %v157 = vpop.permute.xlu0 %156
    %158 = vrot.lane.b32.xlu0 %v129, 126
    %v159 = vpop.permute.xlu0 %158
    %160 = vrot.lane.b32.xlu0 %v130, 126
    %v161 = vpop.permute.xlu0 %160
    %162 = vrot.lane.b32.xlu0 %v131, 126
    %v163 = vpop.permute.xlu0 %162
    %v164 = vld [vmem:[%s1 + $0x4] sm:$0x1]
    %v165 = vperm.slane %v164, 0
    %v166 = vmul.f32 %v157, %v165
    %v167 = vmul.f32 %v159, %v165
    %v168 = vmul.f32 %v161, %v165
    %v169 = vmul.f32 %v163, %v165
    %v170 = vadd.f32 %v152, %v166
    %v171 = vadd.f32 %v153, %v167
    %v172 = vadd.f32 %v154, %v168
    %v173 = vadd.f32 %v155, %v169
    %174 = vrot.lane.b32.xlu0 %v128, 124
    %v175 = vpop.permute.xlu0 %174
    %176 = vrot.lane.b32.xlu0 %v129, 124
    %v177 = vpop.permute.xlu0 %176
    %178 = vrot.lane.b32.xlu0 %v130, 124
    %v179 = vpop.permute.xlu0 %178
    %180 = vrot.lane.b32.xlu0 %v131, 124
    %v181 = vpop.permute.xlu0 %180
    %v182 = vld [vmem:[%s1 + $0x5] sm:$0x1]
    %v183 = vperm.slane %v182, 0
    %v184 = vmul.f32 %v175, %v183
    %v185 = vmul.f32 %v177, %v183
    %v186 = vmul.f32 %v179, %v183
    %v187 = vmul.f32 %v181, %v183
    %v188 = vadd.f32 %v170, %v184
    %v189 = vadd.f32 %v171, %v185
    %v190 = vadd.f32 %v172, %v186
    %v191 = vadd.f32 %v173, %v187
    %vm192 = vcmp.ge.f32.partialorder %v188, 0.0
    %vm193 = vcmp.ge.f32.partialorder %v189, 0.0
    %vm194 = vcmp.ge.f32.partialorder %v190, 0.0
    %vm195 = vcmp.ge.f32.partialorder %v191, 0.0
    %v196 = vld [vmem:[%s2 + $0x1] sm:$0x1]
    %v197 = vld [vmem:[%s3 + $0x1] sm:$0x1]
    %v198 = vperm.slane %v196, 0
    %v199 = vperm.slane %v197, 0
    %v200 = vsel %vm192, %v198, %v199
    %v201 = vsel %vm193, %v198, %v199
    %v202 = vsel %vm194, %v198, %v199
    %v203 = vsel %vm195, %v198, %v199
    %v204 = vmul.f32 %v188, %v200
    %v205 = vmul.f32 %v189, %v201
    %v206 = vmul.f32 %v190, %v202
    %v207 = vmul.f32 %v191, %v203
    %v208 = vadd.f32 %v204, %v128
    %v209 = vadd.f32 %v205, %v129
    %v210 = vadd.f32 %v206, %v130
    %v211 = vadd.f32 %v207, %v131
    %v212 = vld [vmem:[%s4 + $0x1] sm:$0x1]
    %v213 = vld [vmem:[%s5 + $0x1] sm:$0x1]
    %v214 = vperm.slane %v212, 0
    %v215 = vperm.slane %v213, 0
    %v216 = vsel %vm192, %v214, %v215
    %v217 = vsel %vm193, %v214, %v215
    %v218 = vsel %vm194, %v214, %v215
    %v219 = vsel %vm195, %v214, %v215
    %v220 = vadd.f32 %v140, %v216
    %v221 = vadd.f32 %v141, %v217
    %v222 = vadd.f32 %v142, %v218
    %v223 = vadd.f32 %v143, %v219
    %s224 = sld [smem:[#allocation5 + $0x2]]
    %v225 = vstv %s224
    %v226 = vmul.f32 %v208, %v225
    %v227 = vmul.f32 %v209, %v225
    %v228 = vmul.f32 %v210, %v225
    %v229 = vmul.f32 %v211, %v225
    %s230 = sld [smem:[#allocation2 + $0x2]]
    %v231 = vstv %s230
    %v232 = vadd.f32 %v226, %v231
    %v233 = vadd.f32 %v227, %v231
    %v234 = vadd.f32 %v228, %v231
    %v235 = vadd.f32 %v229, %v231
    %236 = vrot.lane.b32.xlu0 %v208, 124
    %v237 = vpop.permute.xlu0 %236
    %238 = vrot.lane.b32.xlu0 %v209, 124
    %v239 = vpop.permute.xlu0 %238
    %240 = vrot.lane.b32.xlu0 %v210, 124
    %v241 = vpop.permute.xlu0 %240
    %242 = vrot.lane.b32.xlu0 %v211, 124
    %v243 = vpop.permute.xlu0 %242
    %v244 = vld [vmem:[%s1 + $0x7] sm:$0x1]
    %v245 = vperm.slane %v244, 0
    %v246 = vmul.f32 %v237, %v245
    %v247 = vmul.f32 %v239, %v245
    %v248 = vmul.f32 %v241, %v245
    %v249 = vmul.f32 %v243, %v245
    %v250 = vadd.f32 %v232, %v246
    %v251 = vadd.f32 %v233, %v247
    %v252 = vadd.f32 %v234, %v248
    %v253 = vadd.f32 %v235, %v249
    %254 = vrot.lane.b32.xlu0 %v208, 120
    %v255 = vpop.permute.xlu0 %254
    %256 = vrot.lane.b32.xlu0 %v209, 120
    %v257 = vpop.permute.xlu0 %256
    %258 = vrot.lane.b32.xlu0 %v210, 120
    %v259 = vpop.permute.xlu0 %258
    %260 = vrot.lane.b32.xlu0 %v211, 120
    %v261 = vpop.permute.xlu0 %260
    %v262 = vld [vmem:[%s1 + $0x8] sm:$0x1]
    %v263 = vperm.slane %v262, 0
    %v264 = vmul.f32 %v255, %v263
    %v265 = vmul.f32 %v257, %v263
    %v266 = vmul.f32 %v259, %v263
    %v267 = vmul.f32 %v261, %v263
    %v268 = vadd.f32 %v250, %v264
    %v269 = vadd.f32 %v251, %v265
    %v270 = vadd.f32 %v252, %v266
    %v271 = vadd.f32 %v253, %v267
    %vm272 = vcmp.ge.f32.partialorder %v268, 0.0
    %vm273 = vcmp.ge.f32.partialorder %v269, 0.0
    %vm274 = vcmp.ge.f32.partialorder %v270, 0.0
    %vm275 = vcmp.ge.f32.partialorder %v271, 0.0
    %v276 = vld [vmem:[%s2 + $0x2] sm:$0x1]
    %v277 = vld [vmem:[%s3 + $0x2] sm:$0x1]
    %v278 = vperm.slane %v276, 0
    %v279 = vperm.slane %v277, 0
    %v280 = vsel %vm272, %v278, %v279
    %v281 = vsel %vm273, %v278, %v279
    %v282 = vsel %vm274, %v278, %v279
    %v283 = vsel %vm275, %v278, %v279
    %v284 = vmul.f32 %v268, %v280
    %v285 = vmul.f32 %v269, %v281
    %v286 = vmul.f32 %v270, %v282
    %v287 = vmul.f32 %v271, %v283
    %v288 = vadd.f32 %v284, %v208
    %v289 = vadd.f32 %v285, %v209
    %v290 = vadd.f32 %v286, %v210
    %v291 = vadd.f32 %v287, %v211
    %v292 = vld [vmem:[%s4 + $0x2] sm:$0x1]
    %v293 = vld [vmem:[%s5 + $0x2] sm:$0x1]
    %v294 = vperm.slane %v292, 0
    %v295 = vperm.slane %v293, 0
    %v296 = vsel %vm272, %v294, %v295
    %v297 = vsel %vm273, %v294, %v295
    %v298 = vsel %vm274, %v294, %v295
    %v299 = vsel %vm275, %v294, %v295
    %v300 = vadd.f32 %v220, %v296
    %v301 = vadd.f32 %v221, %v297
    %v302 = vadd.f32 %v222, %v298
    %v303 = vadd.f32 %v223, %v299
    %s304 = sld [smem:[#allocation5 + $0x3]]
    %v305 = vstv %s304
    %v306 = vmul.f32 %v288, %v305
    %v307 = vmul.f32 %v289, %v305
    %v308 = vmul.f32 %v290, %v305
    %v309 = vmul.f32 %v291, %v305
    %s310 = sld [smem:[#allocation2 + $0x3]]
    %v311 = vstv %s310
    %v312 = vadd.f32 %v306, %v311
    %v313 = vadd.f32 %v307, %v311
    %v314 = vadd.f32 %v308, %v311
    %v315 = vadd.f32 %v309, %v311
    %316 = vrot.lane.b32.xlu0 %v288, 120
    %v317 = vpop.permute.xlu0 %316
    %318 = vrot.lane.b32.xlu0 %v289, 120
    %v319 = vpop.permute.xlu0 %318
    %320 = vrot.lane.b32.xlu0 %v290, 120
    %v321 = vpop.permute.xlu0 %320
    %322 = vrot.lane.b32.xlu0 %v291, 120
    %v323 = vpop.permute.xlu0 %322
    %v324 = vld [vmem:[%s1 + $0xa] sm:$0x1]
    %v325 = vperm.slane %v324, 0
    %v326 = vmul.f32 %v317, %v325
    %v327 = vmul.f32 %v319, %v325
    %v328 = vmul.f32 %v321, %v325
    %v329 = vmul.f32 %v323, %v325
    %v330 = vadd.f32 %v312, %v326
    %v331 = vadd.f32 %v313, %v327
    %v332 = vadd.f32 %v314, %v328
    %v333 = vadd.f32 %v315, %v329
    %vm334 = vcmp.ge.f32.partialorder %v330, 0.0
    %vm335 = vcmp.ge.f32.partialorder %v331, 0.0
    %vm336 = vcmp.ge.f32.partialorder %v332, 0.0
    %vm337 = vcmp.ge.f32.partialorder %v333, 0.0
    %v338 = vld [vmem:[%s2 + $0x3] sm:$0x1]
    %v339 = vld [vmem:[%s3 + $0x3] sm:$0x1]
    %v340 = vperm.slane %v338, 0
    %v341 = vperm.slane %v339, 0
    %v342 = vsel %vm334, %v340, %v341
    %v343 = vsel %vm335, %v340, %v341
    %v344 = vsel %vm336, %v340, %v341
    %v345 = vsel %vm337, %v340, %v341
    %v346 = vmul.f32 %v330, %v342
    %v347 = vmul.f32 %v331, %v343
    %v348 = vmul.f32 %v332, %v344
    %v349 = vmul.f32 %v333, %v345
    %v350 = vadd.f32 %v346, %v288
    %v351 = vadd.f32 %v347, %v289
    %v352 = vadd.f32 %v348, %v290
    %v353 = vadd.f32 %v349, %v291
    %v354 = vld [vmem:[%s4 + $0x3] sm:$0x1]
    %v355 = vld [vmem:[%s5 + $0x3] sm:$0x1]
    %v356 = vperm.slane %v354, 0
    %v357 = vperm.slane %v355, 0
    %v358 = vsel %vm334, %v356, %v357
    %v359 = vsel %vm335, %v356, %v357
    %v360 = vsel %vm336, %v356, %v357
    %v361 = vsel %vm337, %v356, %v357
    %v362 = vadd.f32 %v300, %v358
    %v363 = vadd.f32 %v301, %v359
    %v364 = vadd.f32 %v302, %v360
    %v365 = vadd.f32 %v303, %v361
    %s366 = sld [smem:[#allocation5 + $0x4]]
    %v367 = vstv %s366
    %v368 = vmul.f32 %v350, %v367
    %v369 = vmul.f32 %v351, %v367
    %v370 = vmul.f32 %v352, %v367
    %v371 = vmul.f32 %v353, %v367
    %s372 = sld [smem:[#allocation2 + $0x4]]
    %v373 = vstv %s372
    %v374 = vadd.f32 %v368, %v373
    %v375 = vadd.f32 %v369, %v373
    %v376 = vadd.f32 %v370, %v373
    %v377 = vadd.f32 %v371, %v373
    %vm378 = vcmp.ge.f32.partialorder %v374, 0.0
    %vm379 = vcmp.ge.f32.partialorder %v375, 0.0
    %vm380 = vcmp.ge.f32.partialorder %v376, 0.0
    %vm381 = vcmp.ge.f32.partialorder %v377, 0.0
    %v382 = vld [vmem:[%s2 + $0x4] sm:$0x1]
    %v383 = vld [vmem:[%s3 + $0x4] sm:$0x1]
    %v384 = vperm.slane %v382, 0
    %v385 = vperm.slane %v383, 0
    %v386 = vsel %vm378, %v384, %v385
    %v387 = vsel %vm379, %v384, %v385
    %v388 = vsel %vm380, %v384, %v385
    %v389 = vsel %vm381, %v384, %v385
    %v390 = vmul.f32 %v374, %v386
    %v391 = vmul.f32 %v375, %v387
    %v392 = vmul.f32 %v376, %v388
    %v393 = vmul.f32 %v377, %v389
    %v394 = vadd.f32 %v390, %v350
    %v395 = vadd.f32 %v391, %v351
    %v396 = vadd.f32 %v392, %v352
    %v397 = vadd.f32 %v393, %v353
    %v398 = vld [vmem:[%s4 + $0x4] sm:$0x1]
    %v399 = vld [vmem:[%s5 + $0x4] sm:$0x1]
    %v400 = vperm.slane %v398, 0
    %v401 = vperm.slane %v399, 0
    %v402 = vsel %vm378, %v400, %v401
    %v403 = vsel %vm379, %v400, %v401
    %v404 = vsel %vm380, %v400, %v401
    %v405 = vsel %vm381, %v400, %v401
    %v406 = vadd.f32 %v362, %v402
    %v407 = vadd.f32 %v363, %v403
    %v408 = vadd.f32 %v364, %v404
    %v409 = vadd.f32 %v365, %v405
    %410 = vst [vmem:[#allocation7] sm:$0xff] %v394
    %411 = vst [vmem:[#allocation7 + $0x8] sm:$0xff] %v395
    %412 = vst [vmem:[#allocation7 + $0x10] sm:$0xff] %v396
    %413 = vst [vmem:[#allocation7 + $0x18] sm:$0xff] %v397
    %v414 = vld [vmem:[%s6] sm:$0xff]
    %v415 = vld [vmem:[%s6 + $0x8] sm:$0xff]
    %v416 = vld [vmem:[%s6 + $0x10] sm:$0xff]
    %v417 = vld [vmem:[%s6 + $0x18] sm:$0xff]
    %v418 = vld [vmem:[%s6 + $0x20] sm:$0xff]
    %v419 = vld [vmem:[%s6 + $0x28] sm:$0xff]
    %v420 = vld [vmem:[%s6 + $0x30] sm:$0xff]
    %v421 = vld [vmem:[%s6 + $0x38] sm:$0xff]
    %v422 = vld [vmem:[%s6 + $0x40] sm:$0xff]
    %v423 = vld [vmem:[%s6 + $0x48] sm:$0xff]
    %v424 = vld [vmem:[%s6 + $0x50] sm:$0xff]
    %v425 = vld [vmem:[%s6 + $0x58] sm:$0xff]
    %v426 = vld [vmem:[%s6 + $0x60] sm:$0xff]
    %v427 = vld [vmem:[%s6 + $0x68] sm:$0xff]
    %v428 = vld [vmem:[%s6 + $0x70] sm:$0xff]
    %v429 = vld [vmem:[%s6 + $0x78] sm:$0xff]
    %430 = vmatpush.msra.mxu0 %v429
    %431 = vmatpush.msra.mxu0 %v428
    %432 = vmatpush.msra.mxu0 %v427
    %433 = vmatpush.msra.mxu0 %v426
    %434 = vmatpush.msra.mxu0 %v425
    %435 = vmatpush.msra.mxu0 %v424
    %436 = vmatpush.msra.mxu0 %v423
    %437 = vmatpush.msra.mxu0 %v422
    %438 = vmatpush.msra.mxu0 %v421
    %439 = vmatpush.msra.mxu0 %v420
    %440 = vmatpush.msra.mxu0 %v419
    %441 = vmatpush.msra.mxu0 %v418
    %442 = vmatpush.msra.mxu0 %v417
    %443 = vmatpush.msra.mxu0 %v416
    %444 = vmatpush.msra.mxu0 %v415
    %445 = vmatpush.msra.mxu0 %v414
    %446 = vmatmul.f32.gmra.mxu0 %v406
    %v447 = vpop.f32.mrf.mxu0
    %v448 = vadd.f32 0.0, %v447
    %449 = vmatmul.f32.gmra.mxu0 %v407
    %v450 = vpop.f32.mrf.mxu0
    %v451 = vadd.f32 0.0, %v450
    %452 = vmatmul.f32.gmra.mxu0 %v408
    %v453 = vpop.f32.mrf.mxu0
    %v454 = vadd.f32 0.0, %v453
    %455 = vmatmul.f32.gmra.mxu0 %v409
    %v456 = vpop.f32.mrf.mxu0
    %v457 = vadd.f32 0.0, %v456
    %458 = vdwg.mxu0
    %vm459 = vcmask 64512
    %460 = vst.msk [vmem:[%s10] sm:$0xff] %vm459, %v448
    %461 = vst.msk [vmem:[%s10 + $0x8] sm:$0xff] %vm459, %v451
    %462 = vst.msk [vmem:[%s10 + $0x10] sm:$0xff] %vm459, %v454
    %463 = vst.msk [vmem:[%s10 + $0x18] sm:$0xff] %vm459, %v457
    // Predicated region
    $region46: #{tpu_custom_call.1} parent=1 // pred_check
      _
    $region47: #{tpu_custom_call.1} parent=1 // pred_check_branch
      %465 = sbr.rel (0) target = $region49
    $region48: #{tpu_custom_call.1} parent=1 // pred_region
      %467 = vsyncadd [#allocation3], 0
      %s468 = sshll.u32 [#allocation7], 4
      %s469 = int_to_ptr.vmem [resolvable:$true] %s468
      %s470 = sshll.u32 %s9, 4
      %s471 = int_to_ptr.hbm [resolvable:$true] %s470
      %476 = dma.vmem_to_hbm [thread:$0]  %s469, 512, %s471, [#allocation3], 128, 128, 8
    $region49: #{tpu_custom_call.1} parent=1 // pred_fallthru
      _
    // Predicated region
    $region50: #{tpu_custom_call.1} parent=1 // pred_check
      _
    $region51: #{tpu_custom_call.1} parent=1 // pred_check_branch
      %478 = sbr.rel (0) target = $region53
    $region52: #{tpu_custom_call.1} parent=1 // pred_region
      _
    $region53: #{tpu_custom_call.1} parent=1 // pred_fallthru
      _
    // Predicated region
    $region54: #{tpu_custom_call.1} parent=1 // pred_check
      _
    $region55: #{tpu_custom_call.1} parent=1 // pred_check_branch
      %480 = sbr.rel (0) target = $region57
    $region56: #{tpu_custom_call.1} parent=1 // pred_region
      %482 = dma.done [#allocation3], 512
    $region57: #{tpu_custom_call.1} parent=1 // pred_fallthru
      _
    // Predicated region
    $region58: #{tpu_custom_call.1} parent=1 // pred_check
      _
    $region59: #{tpu_custom_call.1} parent=1 // pred_check_branch
      %484 = sbr.rel (0) target = $region61
    $region60: #{tpu_custom_call.1} parent=1 // pred_region
      _
    $region61: #{tpu_custom_call.1} parent=1 // pred_fallthru
      _
    %485 = vsyncpa [#allocation3], 1
    %486 = vsyncpa [#allocation4], 1
    %487 = vsyncpa [#allocation6], 1

</llo_original>
